<compile_context>
chip_gen: v7x
topology: tpu7x:2x2x1
jax: 0.10.0
libtpu: 0.0.40
codegen_flags: <defaults>
</compile_context>

<pallas_src>
import numpy as np
import jax
import jax.numpy as jnp
from jax.experimental import pallas as pl
from jax.experimental.pallas import tpu as pltpu


KPAD = 32                          # 27 kernel offsets padded to 32 lanes
_VMEM_LIMIT = 32 * 1024 * 1024     # safe scoped-VMEM bound on v5e/v6e/v7x
_MAX_TILE = 8192                   # row-tile upper bound (few MiB / step, fits every gen)


def _round_up(a, b):
    return (a + b - 1) // b * b


# ----------------------------- Pallas kernels --------------------------------

def _offset_proj_kernel(x_ref, w_ref, y_ref):
    """y[n, o] = x[n] . w[:, o] — per-kernel-offset projection of every voxel.

    bf16 operands, f32 accumulation on the MXU, bf16 store (halves the HBM bytes of
    the only large intermediate). One tall matmul over all voxels (grid over N tiles);
    the 27 conv offsets (padded to 32) live on the lane axis."""
    y_ref[...] = jnp.dot(x_ref[...], w_ref[...],
                         preferred_element_type=jnp.float32).astype(jnp.bfloat16)


def _assemble_kernel(vox_ref, g_ref, out_ref):
    """Fused lane-dense tail: neighbor-sum + sigmoid + concat (transposed layout).

    g_ref is [KPAD, tn] with g[o, n] = y[nbr[n, o], o] (zero for missing neighbors /
    pad lanes / pad rows); voxels sit on the lane axis, so the [4, tn] output block is
    stored with full 128-lane vst (no masked partial stores).  vox_ref already carries
    the voxels_3d affine (folded on the host); its row 3 is zero."""
    imp = jnp.sum(g_ref[...].astype(jnp.float32), axis=0, keepdims=True)   # [1, tn]
    mask = 1.0 / (1.0 + jnp.exp(-imp))                                     # exact sigmoid
    row = jax.lax.broadcasted_iota(jnp.int32, out_ref.shape, 0)            # [4, tn]
    out_ref[...] = jnp.where(row == 3, mask, vox_ref[...])                 # mask -> row 3


# ----------------------------- kernel wrappers --------------------------------

def offset_projection(x_bf16, w_bf16, tm):
    n_pad, cin = x_bf16.shape
    kpad = w_bf16.shape[1]
    return pl.pallas_call(
        _offset_proj_kernel,
        out_shape=jax.ShapeDtypeStruct((n_pad, kpad), jnp.bfloat16),
        grid=(n_pad // tm,),
        in_specs=[pl.BlockSpec((tm, cin), lambda i: (i, 0)),
                  pl.BlockSpec((cin, kpad), lambda i: (0, 0))],
        out_specs=pl.BlockSpec((tm, kpad), lambda i: (i, 0)),
        compiler_params=pltpu.CompilerParams(
            dimension_semantics=("parallel",),
            vmem_limit_bytes=_VMEM_LIMIT),
    )(x_bf16, w_bf16)


def assemble_output(vox_t, g_t, tm):
    kpad, n_pad = g_t.shape
    return pl.pallas_call(
        _assemble_kernel,
        out_shape=jax.ShapeDtypeStruct((4, n_pad), jnp.float32),
        grid=(n_pad // tm,),
        in_specs=[pl.BlockSpec((4, tm), lambda i: (0, i)),
                  pl.BlockSpec((kpad, tm), lambda i: (0, i))],
        out_specs=pl.BlockSpec((4, tm), lambda i: (0, i)),
        compiler_params=pltpu.CompilerParams(
            dimension_semantics=("parallel",),
            vmem_limit_bytes=_VMEM_LIMIT),
    )(vox_t, g_t)


# --------------------------- sparse bookkeeping (host) -------------------------

def build_neighbor_table(coords, sentinel):
    """coords int [N, 4] = (b, z, y, x).  Returns [N, 27] neighbor voxel row indices;
    offsets (dz, dy, dx) row-major over {-1, 0, 1}^3; missing neighbor -> sentinel.
    Vectorized sorted flat-key join (spconv's submanifold indice-pair build): host glue,
    no Python-level per-voxel loops."""
    c = np.asarray(coords, np.int64)
    n = c.shape[0]
    b, z, y, x = c[:, 0], c[:, 1], c[:, 2], c[:, 3]
    zd = int(z.max()) + 3
    yd = int(y.max()) + 3
    xd = int(x.max()) + 3

    def key(bb, zz, yy, xx):
        return ((bb * zd + (zz + 1)) * yd + (yy + 1)) * xd + (xx + 1)

    keys = key(b, z, y, x)
    order = np.argsort(keys)
    keys_sorted = keys[order]

    nbr = np.full((n, 27), sentinel, np.int32)
    o = 0
    for dz in (-1, 0, 1):
        for dy in (-1, 0, 1):
            for dx in (-1, 0, 1):
                qk = key(b, z + dz, y + dy, x + dx)
                pos = np.clip(np.searchsorted(keys_sorted, qk), 0, n - 1)
                hit = keys_sorted[pos] == qk
                nbr[:, o] = np.where(hit, order[pos], sentinel)
                o += 1
    return nbr


# ------------------------------ module forward ---------------------------------

def voxel_classify_head_forward(coords, features, w_conv, *, voxel_stride,
                                voxel_size, point_cloud_range, max_tile=_MAX_TILE):
    """Eval-mode VoxelClassifyHead.forward.

    coords   int32 [N, 4] = (batch, z, y, x)   (x.indices)
    features f32   [N, Cin]                     (x.features)
    w_conv   f32   [27, Cin, 1]                 (SubMConv3d weight, offset-major)
    Returns ([N, 4] = concat(voxels_3d, sigmoid(conv_imp(x))), loss=0.0).
    """
    coords = np.asarray(coords)
    n, cin = features.shape

    # Both kernels are HBM/per-step-overhead bound: pick the largest row tile that
    # still keeps per-step VMEM in the low MiB (safe even on v7x's 64 MiB/TC).
    tm = min(max_tile, _round_up(n + 1, 512))
    n_pad = _round_up(n + 1, tm)      # >= n + 1 so row `n` is a guaranteed zero row

    # conv weight flattened to one lane per kernel offset (Cout == 1), zero-padded.
    w = jnp.zeros((cin, KPAD), jnp.bfloat16).at[:, :27].set(
        jnp.transpose(jnp.asarray(w_conv, jnp.bfloat16)[:, :, 0], (1, 0)))
    x_pad = jnp.zeros((n_pad, cin), jnp.bfloat16).at[:n].set(
        jnp.asarray(features, jnp.bfloat16))

    # Pallas kernel 1: per-offset projections (bf16 MXU matmul, f32 accumulate, bf16 store).
    y = offset_projection(x_pad, w, tm)                            # [n_pad, 32] bf16

    # Host glue: neighbor table, PyTorch per-batch concat order, pad rows and pad lanes
    # all folded into ONE flat index array -> a single device gather emits the transposed
    # lane-dense g^T directly (only 27 bf16 scalars/voxel round-trip HBM, once).
    nbr = build_neighbor_table(coords, sentinel=n)                 # [n, 27]
    order = np.argsort(coords[:, 0], kind="stable")                # batch-major concat order
    rows = np.full((n_pad, KPAD), n, dtype=np.int32)               # sentinel -> zero row of y
    rows[:n, :27] = nbr[order]
    flat_idx_t = (rows * np.int32(KPAD)
                  + np.arange(KPAD, dtype=np.int32)[None, :]).T    # [32, n_pad]
    g_t = jnp.take(y.reshape(-1), jnp.asarray(flat_idx_t))         # [32, n_pad] bf16

    # voxels_3d = ((idx + 0.5) * stride) * voxel_size + pcr[:3], folded on the host into a
    # transposed [4, n_pad] buffer (row 3 = 0) so the kernel is a pure load->reduce->store.
    vsize = np.asarray(voxel_size, np.float64)
    pcr3 = np.asarray(point_cloud_range, np.float64)[:3]
    vox_t = np.zeros((4, n_pad), np.float32)
    vox_t[:3, :n] = ((coords[:, 1:4].astype(np.float64) + 0.5) * voxel_stride
                     * vsize[None, :] + pcr3[None, :]).T

    # Pallas kernel 2: fused neighbor-sum + sigmoid + concat, lane-dense [4, n_pad] store.
    out_t = assemble_output(jnp.asarray(vox_t), g_t, tm)

    # TODO(synk): training-only branch (points_in_boxes_gpu + FocalLoss over gt_boxes)
    # is not implemented; eval mode returns loss_box_of_pts = 0 as in the reference.
    return out_t[:, :n].T, 0.0


# ------------------------------- example inputs ---------------------------------

def build_inputs(key, in_channels, grid, n_per_batch):
    keys = jax.random.split(key, len(n_per_batch) + 2)
    coords_list = []
    for b, cnt in enumerate(n_per_batch):
        perm = np.asarray(jax.random.permutation(keys[b], grid ** 3))[:cnt]
        z = perm // (grid * grid)
        y = (perm // grid) % grid
        x = perm % grid
        coords_list.append(np.stack([np.full(cnt, b), z, y, x], axis=1))
    coords = np.concatenate(coords_list, axis=0).astype(np.int32)   # batch-sorted
    n = coords.shape[0]
    features = jax.random.normal(keys[-2], (n, in_channels), jnp.float32)
    w_conv = 0.1 * jax.random.normal(keys[-1], (27, in_channels, 1), jnp.float32)
    return coords, features, w_conv


# ------------------------------------ main ---------------------------------------

if __name__ == "__main__":
    key = jax.random.PRNGKey(0)
    in_channels = 16
    voxel_stride = 8
    voxel_size = [0.125, 0.05, 0.05]
    point_cloud_range = [-3.0, -40.0, 0.0, 1.0, 40.0, 70.4]

    coords, features, w_conv = build_inputs(key, in_channels, grid=8,
                                            n_per_batch=[200, 150])
    n = coords.shape[0]

    out, loss = voxel_classify_head_forward(
        coords, features, w_conv, voxel_stride=voxel_stride,
        voxel_size=voxel_size, point_cloud_range=point_cloud_range)
    out = jax.block_until_ready(out)

    assert out.shape == (n, 4)
    assert bool(jnp.all(jnp.isfinite(out)))
    assert loss == 0.0

    # Pure-JAX (f32, dense gather) reference of the module forward for a sanity check.
    nbr = build_neighbor_table(coords, sentinel=n)
    xp = jnp.concatenate([features, jnp.zeros((1, in_channels), jnp.float32)], axis=0)
    gathered = jnp.take(xp, jnp.asarray(nbr.reshape(-1)),
                        axis=0).reshape(n, 27, in_channels)
    imp_ref = jnp.einsum("nkc,kc->n", gathered, w_conv[:, :, 0])
    order = np.argsort(coords[:, 0], kind="stable")
    mask_ref = jax.nn.sigmoid(imp_ref)[jnp.asarray(order)]
    idx = jnp.asarray(coords[:, 1:4], jnp.float32)
    vox_ref = ((idx + 0.5) * voxel_stride) \
        * jnp.asarray(voxel_size, jnp.float32)[None, :] \
        + jnp.asarray(point_cloud_range[:3], jnp.float32)[None, :]
    ref = jnp.concatenate([vox_ref, mask_ref[:, None]], axis=-1)
    err = float(jnp.max(jnp.abs(out - ref)))
    assert err < 5e-2, f"max abs err vs reference: {err}"

    print("KERNEL_OK")
</pallas_src>

<mosaic_0001>
module attributes {stable_mosaic.version = 11 : i64} {
  func.func @_offset_proj_kernel(%arg0: i32, %arg1: memref<512x16xbf16, #tpu.memory_space<vmem>>, %arg2: memref<16x32xbf16, #tpu.memory_space<vmem>>, %arg3: memref<512x32xbf16, #tpu.memory_space<vmem>>) attributes {dimension_semantics = [#tpu.dimension_semantics<parallel>], iteration_bounds = array<i64: 1>, scalar_prefetch = 0 : i64, scratch_operands = 0 : i64, tpu.core_type = #tpu.core_type<tc>, window_params = [{transform_indices = @transform_0, window_bounds = array<i64: 512, 16>}, {pipeline_mode = #tpu.pipeline_mode<synchronous>, transform_indices = @transform_1, window_bounds = array<i64: 16, 32>}, {transform_indices = @transform_2, window_bounds = array<i64: 512, 32>}]} {
    %c0 = arith.constant 0 : index
    %c0_0 = arith.constant 0 : index
    %0 = vector.load %arg1[%c0, %c0_0] : memref<512x16xbf16, #tpu.memory_space<vmem>>, vector<512x16xbf16>
    %c0_1 = arith.constant 0 : index
    %c0_2 = arith.constant 0 : index
    %1 = vector.load %arg2[%c0_1, %c0_2] : memref<16x32xbf16, #tpu.memory_space<vmem>>, vector<16x32xbf16>
    %cst = arith.constant dense<0.000000e+00> : vector<512x32xf32>
    %2 = tpu.matmul %0, %1, %cst {dimension_numbers = #tpu.dot_dimension_numbers<[1], [0], [0], [1], [0, 0, 1, 1], [], []>} : vector<512x16xbf16>, vector<16x32xbf16>, vector<512x32xf32> -> vector<512x32xf32>
    %3 = arith.truncf %2 : vector<512x32xf32> to vector<512x32xbf16>
    %c0_3 = arith.constant 0 : index
    %c0_4 = arith.constant 0 : index
    %4 = vector.load %arg3[%c0_3, %c0_4] : memref<512x32xbf16, #tpu.memory_space<vmem>>, vector<512x32xbf16>
    tpu.vector_store %arg3[%c0_3, %c0_4], %3 {strides = array<i32>} : memref<512x32xbf16, #tpu.memory_space<vmem>>, vector<512x32xbf16>,
    return
  }
  func.func @transform_0(%arg0: i32) -> (i32, i32) {
    %c0_i32 = arith.constant 0 : i32
    %c0_i32_0 = arith.constant 0 : i32
    return %arg0, %c0_i32 : i32, i32
  }
  func.func @transform_1(%arg0: i32) -> (i32, i32) {
    %c0_i32 = arith.constant 0 : i32
    %c0_i32_0 = arith.constant 0 : i32
    %c0_i32_1 = arith.constant 0 : i32
    return %c0_i32, %c0_i32_0 : i32, i32
  }
  func.func @transform_2(%arg0: i32) -> (i32, i32) {
    %c0_i32 = arith.constant 0 : i32
    %c0_i32_0 = arith.constant 0 : i32
    return %arg0, %c0_i32 : i32, i32
  }
}

</mosaic_0001>

<llo_original>
// kernel: tpu_custom_call.1
$region0: #{tpu_custom_call.1}
  #allocation0 [shape = 'u32[]', space=smem, size = 0x4, offset = 0x4, fixed_abs, tag = 'smem constant byte address 0x4 - core index']
  #allocation1 [shape = 'u32[144,128]{1,0:T(1,128)}', space=vmem, size = 0x12000, scoped, tag = 'internal scratch']
  %s0 = inlined_call_operand.vmem [shape: bf16[512,16], index: 0, kind: input, shape index: {}]
  %s1 = inlined_call_operand.vmem [shape: bf16[16,32], index: 1, kind: input, shape index: {}]
  %s2 = inlined_call_operand.vmem [shape: bf16[512,32], index: 2, kind: output, shape index: {}]
  %s3 = sld [smem:[#allocation0]]
  $region18: #{tpu_custom_call.1} parent=0
    _
  %s5 = ssub.s32 1, %s3
  %s6 = scalar_select 0, %s5, %s3
  // Predicated region
  $region2: #{tpu_custom_call.1} parent=0 // pred_check
    _
  $region3: #{tpu_custom_call.1} parent=0 // pred_check_branch
    %8 = sbr.rel (0) target = $region5
  $region4: #{tpu_custom_call.1} parent=0 // pred_region
    _
  $region5: #{tpu_custom_call.1} parent=0 // pred_fallthru
    _
  // Predicated region
  $region6: #{tpu_custom_call.1} parent=0 // pred_check
    _
  $region7: #{tpu_custom_call.1} parent=0 // pred_check_branch
    %10 = sbr.rel (0) target = $region9
  $region8: #{tpu_custom_call.1} parent=0 // pred_region
    _
  $region9: #{tpu_custom_call.1} parent=0 // pred_fallthru
    _
  %v12 = vld [vmem:[%s0] sm:$0xf]
  %v13 = vld [vmem:[%s0 + $0x4] sm:$0xf]
  %v14 = vld [vmem:[%s0 + $0x8] sm:$0xf]
  %v15 = vld [vmem:[%s0 + $0xc] sm:$0xf]
  %v16 = vld [vmem:[%s0 + $0x10] sm:$0xf]
  %v17 = vld [vmem:[%s0 + $0x14] sm:$0xf]
  %v18 = vld [vmem:[%s0 + $0x18] sm:$0xf]
  %v19 = vld [vmem:[%s0 + $0x1c] sm:$0xf]
  %v20 = vld [vmem:[%s0 + $0x20] sm:$0xf]
  %v21 = vld [vmem:[%s0 + $0x24] sm:$0xf]
  %v22 = vld [vmem:[%s0 + $0x28] sm:$0xf]
  %v23 = vld [vmem:[%s0 + $0x2c] sm:$0xf]
  %v24 = vld [vmem:[%s0 + $0x30] sm:$0xf]
  %v25 = vld [vmem:[%s0 + $0x34] sm:$0xf]
  %v26 = vld [vmem:[%s0 + $0x38] sm:$0xf]
  %v27 = vld [vmem:[%s0 + $0x3c] sm:$0xf]
  %v28 = vld [vmem:[%s0 + $0x40] sm:$0xf]
  %v29 = vld [vmem:[%s0 + $0x44] sm:$0xf]
  %v30 = vld [vmem:[%s0 + $0x48] sm:$0xf]
  %v31 = vld [vmem:[%s0 + $0x4c] sm:$0xf]
  %v32 = vld [vmem:[%s0 + $0x50] sm:$0xf]
  %v33 = vld [vmem:[%s0 + $0x54] sm:$0xf]
  %v34 = vld [vmem:[%s0 + $0x58] sm:$0xf]
  %v35 = vld [vmem:[%s0 + $0x5c] sm:$0xf]
  %v36 = vld [vmem:[%s0 + $0x60] sm:$0xf]
  %v37 = vld [vmem:[%s0 + $0x64] sm:$0xf]
  %v38 = vld [vmem:[%s0 + $0x68] sm:$0xf]
  %v39 = vld [vmem:[%s0 + $0x6c] sm:$0xf]
  %v40 = vld [vmem:[%s0 + $0x70] sm:$0xf]
  %v41 = vld [vmem:[%s0 + $0x74] sm:$0xf]
  %v42 = vld [vmem:[%s0 + $0x78] sm:$0xf]
  %v43 = vld [vmem:[%s0 + $0x7c] sm:$0xf]
  %v44 = vld [vmem:[%s0 + $0x80] sm:$0xf]
  %v45 = vld [vmem:[%s0 + $0x84] sm:$0xf]
  %v46 = vld [vmem:[%s0 + $0x88] sm:$0xf]
  %v47 = vld [vmem:[%s0 + $0x8c] sm:$0xf]
  %v48 = vld [vmem:[%s0 + $0x90] sm:$0xf]
  %v49 = vld [vmem:[%s0 + $0x94] sm:$0xf]
  %v50 = vld [vmem:[%s0 + $0x98] sm:$0xf]
  %v51 = vld [vmem:[%s0 + $0x9c] sm:$0xf]
  %v52 = vld [vmem:[%s0 + $0xa0] sm:$0xf]
  %v53 = vld [vmem:[%s0 + $0xa4] sm:$0xf]
  %v54 = vld [vmem:[%s0 + $0xa8] sm:$0xf]
  %v55 = vld [vmem:[%s0 + $0xac] sm:$0xf]
  %v56 = vld [vmem:[%s0 + $0xb0] sm:$0xf]
  %v57 = vld [vmem:[%s0 + $0xb4] sm:$0xf]
  %v58 = vld [vmem:[%s0 + $0xb8] sm:$0xf]
  %v59 = vld [vmem:[%s0 + $0xbc] sm:$0xf]
  %v60 = vld [vmem:[%s0 + $0xc0] sm:$0xf]
  %v61 = vld [vmem:[%s0 + $0xc4] sm:$0xf]
  %v62 = vld [vmem:[%s0 + $0xc8] sm:$0xf]
  %v63 = vld [vmem:[%s0 + $0xcc] sm:$0xf]
  %v64 = vld [vmem:[%s0 + $0xd0] sm:$0xf]
  %v65 = vld [vmem:[%s0 + $0xd4] sm:$0xf]
  %v66 = vld [vmem:[%s0 + $0xd8] sm:$0xf]
  %v67 = vld [vmem:[%s0 + $0xdc] sm:$0xf]
  %v68 = vld [vmem:[%s0 + $0xe0] sm:$0xf]
  %v69 = vld [vmem:[%s0 + $0xe4] sm:$0xf]
  %v70 = vld [vmem:[%s0 + $0xe8] sm:$0xf]
  %v71 = vld [vmem:[%s0 + $0xec] sm:$0xf]
  %v72 = vld [vmem:[%s0 + $0xf0] sm:$0xf]
  %v73 = vld [vmem:[%s0 + $0xf4] sm:$0xf]
  %v74 = vld [vmem:[%s0 + $0xf8] sm:$0xf]
  %v75 = vld [vmem:[%s0 + $0xfc] sm:$0xf]
  %v76 = vld [vmem:[%s1] sm:$0xf]
  %v77 = vld [vmem:[%s1 + $0x4] sm:$0xf]
  %v142 = vunpack.c.l.b16 %v12
  %v143 = vunpack.c.l.b16 %v13
  %v144 = vunpack.c.l.b16 %v14
  %v145 = vunpack.c.l.b16 %v15
  %v146 = vunpack.c.l.b16 %v16
  %v147 = vunpack.c.l.b16 %v17
  %v148 = vunpack.c.l.b16 %v18
  %v149 = vunpack.c.l.b16 %v19
  %v150 = vunpack.c.l.b16 %v20
  %v151 = vunpack.c.l.b16 %v21
  %v152 = vunpack.c.l.b16 %v22
  %v153 = vunpack.c.l.b16 %v23
  %v154 = vunpack.c.l.b16 %v24
  %v155 = vunpack.c.l.b16 %v25
  %v156 = vunpack.c.l.b16 %v26
  %v157 = vunpack.c.l.b16 %v27
  %v158 = vunpack.c.l.b16 %v28
  %v159 = vunpack.c.l.b16 %v29
  %v160 = vunpack.c.l.b16 %v30
  %v161 = vunpack.c.l.b16 %v31
  %v162 = vunpack.c.l.b16 %v32
  %v163 = vunpack.c.l.b16 %v33
  %v164 = vunpack.c.l.b16 %v34
  %v165 = vunpack.c.l.b16 %v35
  %v166 = vunpack.c.l.b16 %v36
  %v167 = vunpack.c.l.b16 %v37
  %v168 = vunpack.c.l.b16 %v38
  %v169 = vunpack.c.l.b16 %v39
  %v170 = vunpack.c.l.b16 %v40
  %v171 = vunpack.c.l.b16 %v41
  %v172 = vunpack.c.l.b16 %v42
  %v173 = vunpack.c.l.b16 %v43
  %v174 = vunpack.c.l.b16 %v44
  %v175 = vunpack.c.l.b16 %v45
  %v176 = vunpack.c.l.b16 %v46
  %v177 = vunpack.c.l.b16 %v47
  %v178 = vunpack.c.l.b16 %v48
  %v179 = vunpack.c.l.b16 %v49
  %v180 = vunpack.c.l.b16 %v50
  %v181 = vunpack.c.l.b16 %v51
  %v182 = vunpack.c.l.b16 %v52
  %v183 = vunpack.c.l.b16 %v53
  %v184 = vunpack.c.l.b16 %v54
  %v185 = vunpack.c.l.b16 %v55
  %v186 = vunpack.c.l.b16 %v56
  %v187 = vunpack.c.l.b16 %v57
  %v188 = vunpack.c.l.b16 %v58
  %v189 = vunpack.c.l.b16 %v59
  %v190 = vunpack.c.l.b16 %v60
  %v191 = vunpack.c.l.b16 %v61
  %v192 = vunpack.c.l.b16 %v62
  %v193 = vunpack.c.l.b16 %v63
  %v194 = vunpack.c.l.b16 %v64
  %v195 = vunpack.c.l.b16 %v65
  %v196 = vunpack.c.l.b16 %v66
  %v197 = vunpack.c.l.b16 %v67
  %v198 = vunpack.c.l.b16 %v68
  %v199 = vunpack.c.l.b16 %v69
  %v200 = vunpack.c.l.b16 %v70
  %v201 = vunpack.c.l.b16 %v71
  %v202 = vunpack.c.l.b16 %v72
  %v203 = vunpack.c.l.b16 %v73
  %v204 = vunpack.c.l.b16 %v74
  %v205 = vunpack.c.l.b16 %v75
  %v206 = vpack.c.b16 %v143, %v142
  %v207 = vpack.c.b16 %v145, %v144
  %v208 = vpack.c.b16 %v147, %v146
  %v209 = vpack.c.b16 %v149, %v148
  %v210 = vpack.c.b16 %v151, %v150
  %v211 = vpack.c.b16 %v153, %v152
  %v212 = vpack.c.b16 %v155, %v154
  %v213 = vpack.c.b16 %v157, %v156
  %v214 = vpack.c.b16 %v159, %v158
  %v215 = vpack.c.b16 %v161, %v160
  %v216 = vpack.c.b16 %v163, %v162
  %v217 = vpack.c.b16 %v165, %v164
  %v218 = vpack.c.b16 %v167, %v166
  %v219 = vpack.c.b16 %v169, %v168
  %v220 = vpack.c.b16 %v171, %v170
  %v221 = vpack.c.b16 %v173, %v172
  %v222 = vpack.c.b16 %v175, %v174
  %v223 = vpack.c.b16 %v177, %v176
  %v224 = vpack.c.b16 %v179, %v178
  %v225 = vpack.c.b16 %v181, %v180
  %v226 = vpack.c.b16 %v183, %v182
  %v227 = vpack.c.b16 %v185, %v184
  %v228 = vpack.c.b16 %v187, %v186
  %v229 = vpack.c.b16 %v189, %v188
  %v230 = vpack.c.b16 %v191, %v190
  %v231 = vpack.c.b16 %v193, %v192
  %v232 = vpack.c.b16 %v195, %v194
  %v233 = vpack.c.b16 %v197, %v196
  %v234 = vpack.c.b16 %v199, %v198
  %v235 = vpack.c.b16 %v201, %v200
  %v236 = vpack.c.b16 %v203, %v202
  %v237 = vpack.c.b16 %v205, %v204
  %v240 = vunpack.c.l.b16 %v76
  %v241 = vunpack.c.l.b16 %v77
  %v242 = vpack.c.b16 %v241, %v240
  %vm244 = vcmask 130048
  %v246 = vsel %vm244, %v206, 0
  %v249 = vsel %vm244, %v207, 0
  %v252 = vsel %vm244, %v208, 0
  %v255 = vsel %vm244, %v209, 0
  %v258 = vsel %vm244, %v210, 0
  %v261 = vsel %vm244, %v211, 0
  %v264 = vsel %vm244, %v212, 0
  %v267 = vsel %vm244, %v213, 0
  %v270 = vsel %vm244, %v214, 0
  %v273 = vsel %vm244, %v215, 0
  %v276 = vsel %vm244, %v216, 0
  %v279 = vsel %vm244, %v217, 0
  %v282 = vsel %vm244, %v218, 0
  %v285 = vsel %vm244, %v219, 0
  %v288 = vsel %vm244, %v220, 0
  %v291 = vsel %vm244, %v221, 0
  %v294 = vsel %vm244, %v222, 0
  %v297 = vsel %vm244, %v223, 0
  %v300 = vsel %vm244, %v224, 0
  %v303 = vsel %vm244, %v225, 0
  %v306 = vsel %vm244, %v226, 0
  %v309 = vsel %vm244, %v227, 0
  %v312 = vsel %vm244, %v228, 0
  %v315 = vsel %vm244, %v229, 0
  %v318 = vsel %vm244, %v230, 0
  %v321 = vsel %vm244, %v231, 0
  %v324 = vsel %vm244, %v232, 0
  %v327 = vsel %vm244, %v233, 0
  %v330 = vsel %vm244, %v234, 0
  %v333 = vsel %vm244, %v235, 0
  %v336 = vsel %vm244, %v236, 0
  %v339 = vsel %vm244, %v237, 0
  %341 = vmatprep.subr.bf16.mxu0 0
  %342 = vmatpush1.bf16.msra.mxu0 %v242
  %343 = vmatprep.subr.bf16.mxu0 0
  %344 = vmatpush1.bf16.msra.mxu0 0
  %345 = vmatprep.subr.bf16.mxu0 0
  %346 = vmatpush1.bf16.msra.mxu0 0
  %347 = vmatprep.subr.bf16.mxu0 0
  %348 = vmatpush1.bf16.msra.mxu0 0
  %349 = vmatprep.subr.bf16.mxu0 0
  %350 = vmatpush1.bf16.msra.mxu0 0
  %351 = vmatprep.subr.bf16.mxu0 0
  %352 = vmatpush1.bf16.msra.mxu0 0
  %353 = vmatprep.subr.bf16.mxu0 0
  %354 = vmatpush1.bf16.msra.mxu0 0
  %355 = vmatprep.subr.bf16.mxu0 0
  %356 = vmatpush1.bf16.msra.mxu0 0
  %357 = vmatprep.subr.bf16.mxu0 0
  %358 = vmatpush1.bf16.msra.mxu0 0
  %359 = vmatprep.subr.bf16.mxu0 0
  %360 = vmatpush1.bf16.msra.mxu0 0
  %361 = vmatprep.subr.bf16.mxu0 0
  %362 = vmatpush1.bf16.msra.mxu0 0
  %363 = vmatprep.subr.bf16.mxu0 0
  %364 = vmatpush1.bf16.msra.mxu0 0
  %365 = vmatprep.subr.bf16.mxu0 0
  %366 = vmatpush1.bf16.msra.mxu0 0
  %367 = vmatprep.subr.bf16.mxu0 0
  %368 = vmatpush1.bf16.msra.mxu0 0
  %369 = vmatprep.subr.bf16.mxu0 0
  %370 = vmatpush1.bf16.msra.mxu0 0
  %371 = vmatprep.subr.bf16.mxu0 0
  %372 = vmatpush1.bf16.msra.mxu0 0
  %373 = vmatprep.mubr.bf16.mxu0 0
  %374 = vmatmul.mubr.bf16.gmra.mrb[0].mxu0 %v246
  %v375 = vpop.f32.mrb[0].mxu0
  %v376 = vadd.f32 0.0, %v375
  %v377 = vpop.f32.mrb[0].mxu0
  %v378 = vpop.f32.mrb[0].mxu0
  %v379 = vadd.f32 0.0, %v378
  %v380 = vpop.f32.mrb[0].mxu0
  %381 = vmatprep.mubr.bf16.mxu0 0
  %382 = vmatmul.mubr.bf16.gmra.mrb[0].mxu0 %v249
  %v383 = vpop.f32.mrb[0].mxu0
  %v384 = vadd.f32 0.0, %v383
  %v385 = vpop.f32.mrb[0].mxu0
  %v386 = vpop.f32.mrb[0].mxu0
  %v387 = vadd.f32 0.0, %v386
  %v388 = vpop.f32.mrb[0].mxu0
  %389 = vmatprep.mubr.bf16.mxu0 0
  %390 = vmatmul.mubr.bf16.gmra.mrb[0].mxu0 %v252
  %v391 = vpop.f32.mrb[0].mxu0
  %v392 = vadd.f32 0.0, %v391
  %v393 = vpop.f32.mrb[0].mxu0
  %v394 = vpop.f32.mrb[0].mxu0
  %v395 = vadd.f32 0.0, %v394
  %v396 = vpop.f32.mrb[0].mxu0
  %397 = vmatprep.mubr.bf16.mxu0 0
  %398 = vmatmul.mubr.bf16.gmra.mrb[0].mxu0 %v255
  %v399 = vpop.f32.mrb[0].mxu0
  %v400 = vadd.f32 0.0, %v399
  %v401 = vpop.f32.mrb[0].mxu0
  %v402 = vpop.f32.mrb[0].mxu0
  %v403 = vadd.f32 0.0, %v402
  %v404 = vpop.f32.mrb[0].mxu0
  %405 = vmatprep.mubr.bf16.mxu0 0
  %406 = vmatmul.mubr.bf16.gmra.mrb[0].mxu0 %v258
  %v407 = vpop.f32.mrb[0].mxu0
  %v408 = vadd.f32 0.0, %v407
  %v409 = vpop.f32.mrb[0].mxu0
  %v410 = vpop.f32.mrb[0].mxu0
  %v411 = vadd.f32 0.0, %v410
  %v412 = vpop.f32.mrb[0].mxu0
  %413 = vmatprep.mubr.bf16.mxu0 0
  %414 = vmatmul.mubr.bf16.gmra.mrb[0].mxu0 %v261
  %v415 = vpop.f32.mrb[0].mxu0
  %v416 = vadd.f32 0.0, %v415
  %v417 = vpop.f32.mrb[0].mxu0
  %v418 = vpop.f32.mrb[0].mxu0
  %v419 = vadd.f32 0.0, %v418
  %v420 = vpop.f32.mrb[0].mxu0
  %421 = vmatprep.mubr.bf16.mxu0 0
  %422 = vmatmul.mubr.bf16.gmra.mrb[0].mxu0 %v264
  %v423 = vpop.f32.mrb[0].mxu0
  %v424 = vadd.f32 0.0, %v423
  %v425 = vpop.f32.mrb[0].mxu0
  %v426 = vpop.f32.mrb[0].mxu0
  %v427 = vadd.f32 0.0, %v426
  %v428 = vpop.f32.mrb[0].mxu0
  %429 = vmatprep.mubr.bf16.mxu0 0
  %430 = vmatmul.mubr.bf16.gmra.mrb[0].mxu0 %v267
  %v431 = vpop.f32.mrb[0].mxu0
  %v432 = vadd.f32 0.0, %v431
  %v433 = vpop.f32.mrb[0].mxu0
  %v434 = vpop.f32.mrb[0].mxu0
  %v435 = vadd.f32 0.0, %v434
  %v436 = vpop.f32.mrb[0].mxu0
  %437 = vmatprep.mubr.bf16.mxu0 0
  %438 = vmatmul.mubr.bf16.gmra.mrb[0].mxu0 %v270
  %v439 = vpop.f32.mrb[0].mxu0
  %v440 = vadd.f32 0.0, %v439
  %v441 = vpop.f32.mrb[0].mxu0
  %v442 = vpop.f32.mrb[0].mxu0
  %v443 = vadd.f32 0.0, %v442
  %v444 = vpop.f32.mrb[0].mxu0
  %445 = vmatprep.mubr.bf16.mxu0 0
  %446 = vmatmul.mubr.bf16.gmra.mrb[0].mxu0 %v273
  %v447 = vpop.f32.mrb[0].mxu0
  %v448 = vadd.f32 0.0, %v447
  %v449 = vpop.f32.mrb[0].mxu0
  %v450 = vpop.f32.mrb[0].mxu0
  %v451 = vadd.f32 0.0, %v450
  %v452 = vpop.f32.mrb[0].mxu0
  %453 = vmatprep.mubr.bf16.mxu0 0
  %454 = vmatmul.mubr.bf16.gmra.mrb[0].mxu0 %v276
  %v455 = vpop.f32.mrb[0].mxu0
  %v456 = vadd.f32 0.0, %v455
  %v457 = vpop.f32.mrb[0].mxu0
  %v458 = vpop.f32.mrb[0].mxu0
  %v459 = vadd.f32 0.0, %v458
  %v460 = vpop.f32.mrb[0].mxu0
  %461 = vmatprep.mubr.bf16.mxu0 0
  %462 = vmatmul.mubr.bf16.gmra.mrb[0].mxu0 %v279
  %v463 = vpop.f32.mrb[0].mxu0
  %v464 = vadd.f32 0.0, %v463
  %v465 = vpop.f32.mrb[0].mxu0
  %v466 = vpop.f32.mrb[0].mxu0
  %v467 = vadd.f32 0.0, %v466
  %v468 = vpop.f32.mrb[0].mxu0
  %469 = vmatprep.mubr.bf16.mxu0 0
  %470 = vmatmul.mubr.bf16.gmra.mrb[0].mxu0 %v282
  %v471 = vpop.f32.mrb[0].mxu0
  %v472 = vadd.f32 0.0, %v471
  %v473 = vpop.f32.mrb[0].mxu0
  %v474 = vpop.f32.mrb[0].mxu0
  %v475 = vadd.f32 0.0, %v474
  %v476 = vpop.f32.mrb[0].mxu0
  %477 = vmatprep.mubr.bf16.mxu0 0
  %478 = vmatmul.mubr.bf16.gmra.mrb[0].mxu0 %v285
  %v479 = vpop.f32.mrb[0].mxu0
  %v480 = vadd.f32 0.0, %v479
  %v481 = vpop.f32.mrb[0].mxu0
  %v482 = vpop.f32.mrb[0].mxu0
  %v483 = vadd.f32 0.0, %v482
  %v484 = vpop.f32.mrb[0].mxu0
  %485 = vmatprep.mubr.bf16.mxu0 0
  %486 = vmatmul.mubr.bf16.gmra.mrb[0].mxu0 %v288
  %v487 = vpop.f32.mrb[0].mxu0
  %v488 = vadd.f32 0.0, %v487
  %v489 = vpop.f32.mrb[0].mxu0
  %v490 = vpop.f32.mrb[0].mxu0
  %v491 = vadd.f32 0.0, %v490
  %v492 = vpop.f32.mrb[0].mxu0
  %493 = vmatprep.mubr.bf16.mxu0 0
  %494 = vmatmul.mubr.bf16.gmra.mrb[0].mxu0 %v291
  %v495 = vpop.f32.mrb[0].mxu0
  %v496 = vadd.f32 0.0, %v495
  %v497 = vpop.f32.mrb[0].mxu0
  %v498 = vpop.f32.mrb[0].mxu0
  %v499 = vadd.f32 0.0, %v498
  %v500 = vpop.f32.mrb[0].mxu0
  %501 = vmatprep.mubr.bf16.mxu0 0
  %502 = vmatmul.mubr.bf16.gmra.mrb[0].mxu0 %v294
  %v503 = vpop.f32.mrb[0].mxu0
  %v504 = vadd.f32 0.0, %v503
  %v505 = vpop.f32.mrb[0].mxu0
  %v506 = vpop.f32.mrb[0].mxu0
  %v507 = vadd.f32 0.0, %v506
  %v508 = vpop.f32.mrb[0].mxu0
  %509 = vmatprep.mubr.bf16.mxu0 0
  %510 = vmatmul.mubr.bf16.gmra.mrb[0].mxu0 %v297
  %v511 = vpop.f32.mrb[0].mxu0
  %v512 = vadd.f32 0.0, %v511
  %v513 = vpop.f32.mrb[0].mxu0
  %v514 = vpop.f32.mrb[0].mxu0
  %v515 = vadd.f32 0.0, %v514
  %v516 = vpop.f32.mrb[0].mxu0
  %517 = vmatprep.mubr.bf16.mxu0 0
  %518 = vmatmul.mubr.bf16.gmra.mrb[0].mxu0 %v300
  %v519 = vpop.f32.mrb[0].mxu0
  %v520 = vadd.f32 0.0, %v519
  %v521 = vpop.f32.mrb[0].mxu0
  %v522 = vpop.f32.mrb[0].mxu0
  %v523 = vadd.f32 0.0, %v522
  %v524 = vpop.f32.mrb[0].mxu0
  %525 = vmatprep.mubr.bf16.mxu0 0
  %526 = vmatmul.mubr.bf16.gmra.mrb[0].mxu0 %v303
  %v527 = vpop.f32.mrb[0].mxu0
  %v528 = vadd.f32 0.0, %v527
  %v529 = vpop.f32.mrb[0].mxu0
  %v530 = vpop.f32.mrb[0].mxu0
  %v531 = vadd.f32 0.0, %v530
  %v532 = vpop.f32.mrb[0].mxu0
  %533 = vmatprep.mubr.bf16.mxu0 0
  %534 = vmatmul.mubr.bf16.gmra.mrb[0].mxu0 %v306
  %v535 = vpop.f32.mrb[0].mxu0
  %v536 = vadd.f32 0.0, %v535
  %v537 = vpop.f32.mrb[0].mxu0
  %v538 = vpop.f32.mrb[0].mxu0
  %v539 = vadd.f32 0.0, %v538
  %v540 = vpop.f32.mrb[0].mxu0
  %541 = vmatprep.mubr.bf16.mxu0 0
  %542 = vmatmul.mubr.bf16.gmra.mrb[0].mxu0 %v309
  %v543 = vpop.f32.mrb[0].mxu0
  %v544 = vadd.f32 0.0, %v543
  %v545 = vpop.f32.mrb[0].mxu0
  %v546 = vpop.f32.mrb[0].mxu0
  %v547 = vadd.f32 0.0, %v546
  %v548 = vpop.f32.mrb[0].mxu0
  %549 = vmatprep.mubr.bf16.mxu0 0
  %550 = vmatmul.mubr.bf16.gmra.mrb[0].mxu0 %v312
  %v551 = vpop.f32.mrb[0].mxu0
  %v552 = vadd.f32 0.0, %v551
  %v553 = vpop.f32.mrb[0].mxu0
  %v554 = vpop.f32.mrb[0].mxu0
  %v555 = vadd.f32 0.0, %v554
  %v556 = vpop.f32.mrb[0].mxu0
  %557 = vmatprep.mubr.bf16.mxu0 0
  %558 = vmatmul.mubr.bf16.gmra.mrb[0].mxu0 %v315
  %v559 = vpop.f32.mrb[0].mxu0
  %v560 = vadd.f32 0.0, %v559
  %v561 = vpop.f32.mrb[0].mxu0
  %v562 = vpop.f32.mrb[0].mxu0
  %v563 = vadd.f32 0.0, %v562
  %v564 = vpop.f32.mrb[0].mxu0
  %565 = vmatprep.mubr.bf16.mxu0 0
  %566 = vmatmul.mubr.bf16.gmra.mrb[0].mxu0 %v318
  %v567 = vpop.f32.mrb[0].mxu0
  %v568 = vadd.f32 0.0, %v567
  %v569 = vpop.f32.mrb[0].mxu0
  %v570 = vpop.f32.mrb[0].mxu0
  %v571 = vadd.f32 0.0, %v570
  %v572 = vpop.f32.mrb[0].mxu0
  %573 = vmatprep.mubr.bf16.mxu0 0
  %574 = vmatmul.mubr.bf16.gmra.mrb[0].mxu0 %v321
  %v575 = vpop.f32.mrb[0].mxu0
  %v576 = vadd.f32 0.0, %v575
  %v577 = vpop.f32.mrb[0].mxu0
  %v578 = vpop.f32.mrb[0].mxu0
  %v579 = vadd.f32 0.0, %v578
  %v580 = vpop.f32.mrb[0].mxu0
  %581 = vmatprep.mubr.bf16.mxu0 0
  %582 = vmatmul.mubr.bf16.gmra.mrb[0].mxu0 %v324
  %v583 = vpop.f32.mrb[0].mxu0
  %v584 = vadd.f32 0.0, %v583
  %v585 = vpop.f32.mrb[0].mxu0
  %v586 = vpop.f32.mrb[0].mxu0
  %v587 = vadd.f32 0.0, %v586
  %v588 = vpop.f32.mrb[0].mxu0
  %589 = vmatprep.mubr.bf16.mxu0 0
  %590 = vmatmul.mubr.bf16.gmra.mrb[0].mxu0 %v327
  %v591 = vpop.f32.mrb[0].mxu0
  %v592 = vadd.f32 0.0, %v591
  %v593 = vpop.f32.mrb[0].mxu0
  %v594 = vpop.f32.mrb[0].mxu0
  %v595 = vadd.f32 0.0, %v594
  %v596 = vpop.f32.mrb[0].mxu0
  %597 = vmatprep.mubr.bf16.mxu0 0
  %598 = vmatmul.mubr.bf16.gmra.mrb[0].mxu0 %v330
  %v599 = vpop.f32.mrb[0].mxu0
  %v600 = vadd.f32 0.0, %v599
  %v601 = vpop.f32.mrb[0].mxu0
  %v602 = vpop.f32.mrb[0].mxu0
  %v603 = vadd.f32 0.0, %v602
  %v604 = vpop.f32.mrb[0].mxu0
  %605 = vmatprep.mubr.bf16.mxu0 0
  %606 = vmatmul.mubr.bf16.gmra.mrb[0].mxu0 %v333
  %v607 = vpop.f32.mrb[0].mxu0
  %v608 = vadd.f32 0.0, %v607
  %v609 = vpop.f32.mrb[0].mxu0
  %v610 = vpop.f32.mrb[0].mxu0
  %v611 = vadd.f32 0.0, %v610
  %v612 = vpop.f32.mrb[0].mxu0
  %613 = vmatprep.mubr.bf16.mxu0 0
  %614 = vmatmul.mubr.bf16.gmra.mrb[0].mxu0 %v336
  %v615 = vpop.f32.mrb[0].mxu0
  %v616 = vadd.f32 0.0, %v615
  %v617 = vpop.f32.mrb[0].mxu0
  %v618 = vpop.f32.mrb[0].mxu0
  %v619 = vadd.f32 0.0, %v618
  %v620 = vpop.f32.mrb[0].mxu0
  %621 = vmatprep.mubr.bf16.mxu0 0
  %622 = vmatmul.mubr.bf16.gmra.mrb[0].mxu0 %v339
  %v623 = vpop.f32.mrb[0].mxu0
  %v624 = vadd.f32 0.0, %v623
  %v625 = vpop.f32.mrb[0].mxu0
  %v626 = vpop.f32.mrb[0].mxu0
  %v627 = vadd.f32 0.0, %v626
  %v628 = vpop.f32.mrb[0].mxu0
  %629 = vdwg.mxu0
  %v630 = vpack.c.bf16 %v379, %v376
  %v631 = vpack.c.bf16 %v387, %v384
  %v632 = vpack.c.bf16 %v395, %v392
  %v633 = vpack.c.bf16 %v403, %v400
  %v634 = vpack.c.bf16 %v411, %v408
  %v635 = vpack.c.bf16 %v419, %v416
  %v636 = vpack.c.bf16 %v427, %v424
  %v637 = vpack.c.bf16 %v435, %v432
  %v638 = vpack.c.bf16 %v443, %v440
  %v639 = vpack.c.bf16 %v451, %v448
  %v640 = vpack.c.bf16 %v459, %v456
  %v641 = vpack.c.bf16 %v467, %v464
  %v642 = vpack.c.bf16 %v475, %v472
  %v643 = vpack.c.bf16 %v483, %v480
  %v644 = vpack.c.bf16 %v491, %v488
  %v645 = vpack.c.bf16 %v499, %v496
  %v646 = vpack.c.bf16 %v507, %v504
  %v647 = vpack.c.bf16 %v515, %v512
  %v648 = vpack.c.bf16 %v523, %v520
  %v649 = vpack.c.bf16 %v531, %v528
  %v650 = vpack.c.bf16 %v539, %v536
  %v651 = vpack.c.bf16 %v547, %v544
  %v652 = vpack.c.bf16 %v555, %v552
  %v653 = vpack.c.bf16 %v563, %v560
  %v654 = vpack.c.bf16 %v571, %v568
  %v655 = vpack.c.bf16 %v579, %v576
  %v656 = vpack.c.bf16 %v587, %v584
  %v657 = vpack.c.bf16 %v595, %v592
  %v658 = vpack.c.bf16 %v603, %v600
  %v659 = vpack.c.bf16 %v611, %v608
  %v660 = vpack.c.bf16 %v619, %v616
  %v661 = vpack.c.bf16 %v627, %v624
  %v694 = vunpack.c.l.b16 %v630
  %v695 = vunpack.c.h.b16 %v630
  %v696 = vunpack.c.l.b16 %v631
  %v697 = vunpack.c.h.b16 %v631
  %v698 = vunpack.c.l.b16 %v632
  %v699 = vunpack.c.h.b16 %v632
  %v700 = vunpack.c.l.b16 %v633
  %v701 = vunpack.c.h.b16 %v633
  %v702 = vunpack.c.l.b16 %v634
  %v703 = vunpack.c.h.b16 %v634
  %v704 = vunpack.c.l.b16 %v635
  %v705 = vunpack.c.h.b16 %v635
  %v706 = vunpack.c.l.b16 %v636
  %v707 = vunpack.c.h.b16 %v636
  %v708 = vunpack.c.l.b16 %v637
  %v709 = vunpack.c.h.b16 %v637
  %v710 = vunpack.c.l.b16 %v638
  %v711 = vunpack.c.h.b16 %v638
  %v712 = vunpack.c.l.b16 %v639
  %v713 = vunpack.c.h.b16 %v639
  %v714 = vunpack.c.l.b16 %v640
  %v715 = vunpack.c.h.b16 %v640
  %v716 = vunpack.c.l.b16 %v641
  %v717 = vunpack.c.h.b16 %v641
  %v718 = vunpack.c.l.b16 %v642
  %v719 = vunpack.c.h.b16 %v642
  %v720 = vunpack.c.l.b16 %v643
  %v721 = vunpack.c.h.b16 %v643
  %v722 = vunpack.c.l.b16 %v644
  %v723 = vunpack.c.h.b16 %v644
  %v724 = vunpack.c.l.b16 %v645
  %v725 = vunpack.c.h.b16 %v645
  %v726 = vunpack.c.l.b16 %v646
  %v727 = vunpack.c.h.b16 %v646
  %v728 = vunpack.c.l.b16 %v647
  %v729 = vunpack.c.h.b16 %v647
  %v730 = vunpack.c.l.b16 %v648
  %v731 = vunpack.c.h.b16 %v648
  %v732 = vunpack.c.l.b16 %v649
  %v733 = vunpack.c.h.b16 %v649
  %v734 = vunpack.c.l.b16 %v650
  %v735 = vunpack.c.h.b16 %v650
  %v736 = vunpack.c.l.b16 %v651
  %v737 = vunpack.c.h.b16 %v651
  %v738 = vunpack.c.l.b16 %v652
  %v739 = vunpack.c.h.b16 %v652
  %v740 = vunpack.c.l.b16 %v653
  %v741 = vunpack.c.h.b16 %v653
  %v742 = vunpack.c.l.b16 %v654
  %v743 = vunpack.c.h.b16 %v654
  %v744 = vunpack.c.l.b16 %v655
  %v745 = vunpack.c.h.b16 %v655
  %v746 = vunpack.c.l.b16 %v656
  %v747 = vunpack.c.h.b16 %v656
  %v748 = vunpack.c.l.b16 %v657
  %v749 = vunpack.c.h.b16 %v657
  %v750 = vunpack.c.l.b16 %v658
  %v751 = vunpack.c.h.b16 %v658
  %v752 = vunpack.c.l.b16 %v659
  %v753 = vunpack.c.h.b16 %v659
  %v754 = vunpack.c.l.b16 %v660
  %v755 = vunpack.c.h.b16 %v660
  %v756 = vunpack.c.l.b16 %v661
  %v757 = vunpack.c.h.b16 %v661
  %v758 = vpack.c.b16 %v694, %v694
  %v759 = vpack.c.b16 %v695, %v695
  %v760 = vpack.c.b16 %v696, %v696
  %v761 = vpack.c.b16 %v697, %v697
  %v762 = vpack.c.b16 %v698, %v698
  %v763 = vpack.c.b16 %v699, %v699
  %v764 = vpack.c.b16 %v700, %v700
  %v765 = vpack.c.b16 %v701, %v701
  %v766 = vpack.c.b16 %v702, %v702
  %v767 = vpack.c.b16 %v703, %v703
  %v768 = vpack.c.b16 %v704, %v704
  %v769 = vpack.c.b16 %v705, %v705
  %v770 = vpack.c.b16 %v706, %v706
  %v771 = vpack.c.b16 %v707, %v707
  %v772 = vpack.c.b16 %v708, %v708
  %v773 = vpack.c.b16 %v709, %v709
  %v774 = vpack.c.b16 %v710, %v710
  %v775 = vpack.c.b16 %v711, %v711
  %v776 = vpack.c.b16 %v712, %v712
  %v777 = vpack.c.b16 %v713, %v713
  %v778 = vpack.c.b16 %v714, %v714
  %v779 = vpack.c.b16 %v715, %v715
  %v780 = vpack.c.b16 %v716, %v716
  %v781 = vpack.c.b16 %v717, %v717
  %v782 = vpack.c.b16 %v718, %v718
  %v783 = vpack.c.b16 %v719, %v719
  %v784 = vpack.c.b16 %v720, %v720
  %v785 = vpack.c.b16 %v721, %v721
  %v786 = vpack.c.b16 %v722, %v722
  %v787 = vpack.c.b16 %v723, %v723
  %v788 = vpack.c.b16 %v724, %v724
  %v789 = vpack.c.b16 %v725, %v725
  %v790 = vpack.c.b16 %v726, %v726
  %v791 = vpack.c.b16 %v727, %v727
  %v792 = vpack.c.b16 %v728, %v728
  %v793 = vpack.c.b16 %v729, %v729
  %v794 = vpack.c.b16 %v730, %v730
  %v795 = vpack.c.b16 %v731, %v731
  %v796 = vpack.c.b16 %v732, %v732
  %v797 = vpack.c.b16 %v733, %v733
  %v798 = vpack.c.b16 %v734, %v734
  %v799 = vpack.c.b16 %v735, %v735
  %v800 = vpack.c.b16 %v736, %v736
  %v801 = vpack.c.b16 %v737, %v737
  %v802 = vpack.c.b16 %v738, %v738
  %v803 = vpack.c.b16 %v739, %v739
  %v804 = vpack.c.b16 %v740, %v740
  %v805 = vpack.c.b16 %v741, %v741
  %v806 = vpack.c.b16 %v742, %v742
  %v807 = vpack.c.b16 %v743, %v743
  %v808 = vpack.c.b16 %v744, %v744
  %v809 = vpack.c.b16 %v745, %v745
  %v810 = vpack.c.b16 %v746, %v746
  %v811 = vpack.c.b16 %v747, %v747
  %v812 = vpack.c.b16 %v748, %v748
  %v813 = vpack.c.b16 %v749, %v749
  %v814 = vpack.c.b16 %v750, %v750
  %v815 = vpack.c.b16 %v751, %v751
  %v816 = vpack.c.b16 %v752, %v752
  %v817 = vpack.c.b16 %v753, %v753
  %v818 = vpack.c.b16 %v754, %v754
  %v819 = vpack.c.b16 %v755, %v755
  %v820 = vpack.c.b16 %v756, %v756
  %v821 = vpack.c.b16 %v757, %v757
  %vm886 = vcmask 257024
  %887 = vst.msk [vmem:[%s2] sm:$0xf] %vm886, %v758
  %888 = vst.msk [vmem:[%s2 + $0x4] sm:$0xf] %vm886, %v759
  %889 = vst.msk [vmem:[%s2 + $0x8] sm:$0xf] %vm886, %v760
  %890 = vst.msk [vmem:[%s2 + $0xc] sm:$0xf] %vm886, %v761
  %891 = vst.msk [vmem:[%s2 + $0x10] sm:$0xf] %vm886, %v762
  %892 = vst.msk [vmem:[%s2 + $0x14] sm:$0xf] %vm886, %v763
  %893 = vst.msk [vmem:[%s2 + $0x18] sm:$0xf] %vm886, %v764
  %894 = vst.msk [vmem:[%s2 + $0x1c] sm:$0xf] %vm886, %v765
  %895 = vst.msk [vmem:[%s2 + $0x20] sm:$0xf] %vm886, %v766
  %896 = vst.msk [vmem:[%s2 + $0x24] sm:$0xf] %vm886, %v767
  %897 = vst.msk [vmem:[%s2 + $0x28] sm:$0xf] %vm886, %v768
  %898 = vst.msk [vmem:[%s2 + $0x2c] sm:$0xf] %vm886, %v769
  %899 = vst.msk [vmem:[%s2 + $0x30] sm:$0xf] %vm886, %v770
  %900 = vst.msk [vmem:[%s2 + $0x34] sm:$0xf] %vm886, %v771
  %901 = vst.msk [vmem:[%s2 + $0x38] sm:$0xf] %vm886, %v772
  %902 = vst.msk [vmem:[%s2 + $0x3c] sm:$0xf] %vm886, %v773
  %903 = vst.msk [vmem:[%s2 + $0x40] sm:$0xf] %vm886, %v774
  %904 = vst.msk [vmem:[%s2 + $0x44] sm:$0xf] %vm886, %v775
  %905 = vst.msk [vmem:[%s2 + $0x48] sm:$0xf] %vm886, %v776
  %906 = vst.msk [vmem:[%s2 + $0x4c] sm:$0xf] %vm886, %v777
  %907 = vst.msk [vmem:[%s2 + $0x50] sm:$0xf] %vm886, %v778
  %908 = vst.msk [vmem:[%s2 + $0x54] sm:$0xf] %vm886, %v779
  %909 = vst.msk [vmem:[%s2 + $0x58] sm:$0xf] %vm886, %v780
  %910 = vst.msk [vmem:[%s2 + $0x5c] sm:$0xf] %vm886, %v781
  %911 = vst.msk [vmem:[%s2 + $0x60] sm:$0xf] %vm886, %v782
  %912 = vst.msk [vmem:[%s2 + $0x64] sm:$0xf] %vm886, %v783
  %913 = vst.msk [vmem:[%s2 + $0x68] sm:$0xf] %vm886, %v784
  %914 = vst.msk [vmem:[%s2 + $0x6c] sm:$0xf] %vm886, %v785
  %915 = vst.msk [vmem:[%s2 + $0x70] sm:$0xf] %vm886, %v786
  %916 = vst.msk [vmem:[%s2 + $0x74] sm:$0xf] %vm886, %v787
  %917 = vst.msk [vmem:[%s2 + $0x78] sm:$0xf] %vm886, %v788
  %918 = vst.msk [vmem:[%s2 + $0x7c] sm:$0xf] %vm886, %v789
  %919 = vst.msk [vmem:[%s2 + $0x80] sm:$0xf] %vm886, %v790
  %920 = vst.msk [vmem:[%s2 + $0x84] sm:$0xf] %vm886, %v791
  %921 = vst.msk [vmem:[%s2 + $0x88] sm:$0xf] %vm886, %v792
  %922 = vst.msk [vmem:[%s2 + $0x8c] sm:$0xf] %vm886, %v793
  %923 = vst.msk [vmem:[%s2 + $0x90] sm:$0xf] %vm886, %v794
  %924 = vst.msk [vmem:[%s2 + $0x94] sm:$0xf] %vm886, %v795
  %925 = vst.msk [vmem:[%s2 + $0x98] sm:$0xf] %vm886, %v796
  %926 = vst.msk [vmem:[%s2 + $0x9c] sm:$0xf] %vm886, %v797
  %927 = vst.msk [vmem:[%s2 + $0xa0] sm:$0xf] %vm886, %v798
  %928 = vst.msk [vmem:[%s2 + $0xa4] sm:$0xf] %vm886, %v799
  %929 = vst.msk [vmem:[%s2 + $0xa8] sm:$0xf] %vm886, %v800
  %930 = vst.msk [vmem:[%s2 + $0xac] sm:$0xf] %vm886, %v801
  %931 = vst.msk [vmem:[%s2 + $0xb0] sm:$0xf] %vm886, %v802
  %932 = vst.msk [vmem:[%s2 + $0xb4] sm:$0xf] %vm886, %v803
  %933 = vst.msk [vmem:[%s2 + $0xb8] sm:$0xf] %vm886, %v804
  %934 = vst.msk [vmem:[%s2 + $0xbc] sm:$0xf] %vm886, %v805
  %935 = vst.msk [vmem:[%s2 + $0xc0] sm:$0xf] %vm886, %v806
  %936 = vst.msk [vmem:[%s2 + $0xc4] sm:$0xf] %vm886, %v807
  %937 = vst.msk [vmem:[%s2 + $0xc8] sm:$0xf] %vm886, %v808
  %938 = vst.msk [vmem:[%s2 + $0xcc] sm:$0xf] %vm886, %v809
  %939 = vst.msk [vmem:[%s2 + $0xd0] sm:$0xf] %vm886, %v810
  %940 = vst.msk [vmem:[%s2 + $0xd4] sm:$0xf] %vm886, %v811
  %941 = vst.msk [vmem:[%s2 + $0xd8] sm:$0xf] %vm886, %v812
  %942 = vst.msk [vmem:[%s2 + $0xdc] sm:$0xf] %vm886, %v813
  %943 = vst.msk [vmem:[%s2 + $0xe0] sm:$0xf] %vm886, %v814
  %944 = vst.msk [vmem:[%s2 + $0xe4] sm:$0xf] %vm886, %v815
  %945 = vst.msk [vmem:[%s2 + $0xe8] sm:$0xf] %vm886, %v816
  %946 = vst.msk [vmem:[%s2 + $0xec] sm:$0xf] %vm886, %v817
  %947 = vst.msk [vmem:[%s2 + $0xf0] sm:$0xf] %vm886, %v818
  %948 = vst.msk [vmem:[%s2 + $0xf4] sm:$0xf] %vm886, %v819
  %949 = vst.msk [vmem:[%s2 + $0xf8] sm:$0xf] %vm886, %v820
  %950 = vst.msk [vmem:[%s2 + $0xfc] sm:$0xf] %vm886, %v821
  // Predicated region
  $region10: #{tpu_custom_call.1} parent=0 // pred_check
    _
  $region11: #{tpu_custom_call.1} parent=0 // pred_check_branch
    %952 = sbr.rel (0) target = $region13
  $region12: #{tpu_custom_call.1} parent=0 // pred_region
    _
  $region13: #{tpu_custom_call.1} parent=0 // pred_fallthru
    _
  // Predicated region
  $region14: #{tpu_custom_call.1} parent=0 // pred_check
    _
  $region15: #{tpu_custom_call.1} parent=0 // pred_check_branch
    %954 = sbr.rel (0) target = $region17
  $region16: #{tpu_custom_call.1} parent=0 // pred_region
    _
  $region17: #{tpu_custom_call.1} parent=0 // pred_fallthru
    _

</llo_original>
